<compile_context>
chip_gen: v7x
topology: tpu7x:2x2x1
jax: 0.10.0
libtpu: 0.0.40
codegen_flags: <defaults>
</compile_context>

<pallas_src>
import functools

import jax
import jax.numpy as jnp
from jax.experimental import pallas as pl
from jax.experimental.pallas import tpu as pltpu


def _tms_kernel(x_ref, m_ref, b_ref, o_ref):
    # x_ref: (bt, I*F)   m_ref: (I*F, I*F)   b_ref: (1, I*F)   o_ref: (bt, I*F)
    out = jnp.dot(x_ref[...], m_ref[...], preferred_element_type=jnp.float32)
    out = out + b_ref[...]                       # (1, I*F) broadcasts over rows
    o_ref[...] = jnp.maximum(out, 0.0).astype(o_ref.dtype)


@functools.partial(jax.jit, static_argnames=("block_b",))
def tms_forward(features: jax.Array, W: jax.Array, b_final: jax.Array,
                *, block_b: int = 1024) -> jax.Array:
    """features: (B, I, F)   W: (I, F, H)   b_final: (I, F)  ->  (B, I, F)"""
    B, I, F = features.shape
    IF = I * F

    # Fused weight: block-diag of per-instance Grams  G_i = W_i @ W_i^T.
    G = jnp.einsum("ifh,igh->ifg", W, W)                    # (I, F, F)
    eye = jnp.eye(I, dtype=W.dtype)
    M = jnp.einsum("ifg,ij->ifjg", G, eye).reshape(IF, IF)  # (I*F, I*F)

    x_flat = features.reshape(B, IF)     # free reshape (no transpose)
    b_flat = b_final.reshape(1, IF)

    # Batch tiling: single grid step at small B; block_b-row tiles otherwise.
    if B <= block_b:
        bt, nb, Bp = B, 1, B
    else:
        bt = block_b                       # multiple of 8
        nb = pl.cdiv(B, bt)
        Bp = nb * bt
        if Bp != B:
            # Fallback pad for ragged batches; prefer block_b dividing B.
            x_flat = jnp.pad(x_flat, ((0, Bp - B), (0, 0)))

    out_flat = pl.pallas_call(
        _tms_kernel,
        out_shape=jax.ShapeDtypeStruct((Bp, IF), features.dtype),
        grid_spec=pltpu.PrefetchScalarGridSpec(
            num_scalar_prefetch=0,
            grid=(nb,),
            in_specs=[
                pl.BlockSpec((bt, IF), lambda b: (b, 0)),   # stream activations
                pl.BlockSpec((IF, IF), lambda b: (0, 0)),   # M resident across tiles
                pl.BlockSpec((1, IF), lambda b: (0, 0)),    # bias resident
            ],
            out_specs=pl.BlockSpec((bt, IF), lambda b: (b, 0)),
        ),
        compiler_params=pltpu.CompilerParams(
            dimension_semantics=("parallel",),              # v7x: both TCs when nb >= 2
        ),
    )(x_flat, M, b_flat)

    if Bp != B:
        out_flat = out_flat[:B]
    return out_flat.reshape(B, I, F)


def reference_forward(features, W, b_final):
    hidden = jnp.einsum("bif,ifh->bih", features, W)
    out = jnp.einsum("bih,ifh->bif", hidden, W)
    return jax.nn.relu(out + b_final)


if __name__ == "__main__":
    # Config: num_instances=4, num_features=32, num_neurons=16; batch=8
    num_instances, num_features, num_neurons = 4, 32, 16
    batch = 8

    key = jax.random.PRNGKey(0)
    k_w, k_x = jax.random.split(key)

    # xavier_normal_ init: std = sqrt(2 / (fan_in + fan_out)) over last two dims
    xavier_std = (2.0 / (num_features + num_neurons)) ** 0.5
    W = xavier_std * jax.random.normal(
        k_w, (num_instances, num_features, num_neurons), dtype=jnp.float32
    )
    b_final = jnp.zeros((num_instances, num_features), dtype=jnp.float32)

    # synthetic batch (analogous to generate_batch with feature_probability=1)
    features = jax.random.uniform(
        k_x, (batch, num_instances, num_features), dtype=jnp.float32
    )

    out = tms_forward(features, W, b_final)
    out = jax.block_until_ready(out)

    ref = reference_forward(features, W, b_final)
    assert out.shape == (batch, num_instances, num_features)
    assert jnp.allclose(out, ref, atol=1e-5, rtol=1e-5)

    print("KERNEL_OK")
</pallas_src>

<mosaic_0001>
module attributes {stable_mosaic.version = 11 : i64} {
  func.func @_tms_kernel(%arg0: i32, %arg1: memref<8x128xf32, #tpu.memory_space<vmem>>, %arg2: memref<128x128xf32, #tpu.memory_space<vmem>>, %arg3: memref<1x128xf32, #tpu.memory_space<vmem>>, %arg4: memref<8x128xf32, #tpu.memory_space<vmem>>) attributes {dimension_semantics = [#tpu.dimension_semantics<parallel>], iteration_bounds = array<i64: 1>, scalar_prefetch = 0 : i64, scratch_operands = 0 : i64, tpu.core_type = #tpu.core_type<tc>, window_params = [{transform_indices = @transform_0, window_bounds = array<i64: 8, 128>}, {pipeline_mode = #tpu.pipeline_mode<synchronous>, transform_indices = @transform_1, window_bounds = array<i64: 128, 128>}, {pipeline_mode = #tpu.pipeline_mode<synchronous>, transform_indices = @transform_2, window_bounds = array<i64: 1, 128>}, {transform_indices = @transform_3, window_bounds = array<i64: 8, 128>}]} {
    %c0 = arith.constant 0 : index
    %c0_0 = arith.constant 0 : index
    %0 = vector.load %arg1[%c0, %c0_0] : memref<8x128xf32, #tpu.memory_space<vmem>>, vector<8x128xf32>
    %c0_1 = arith.constant 0 : index
    %c0_2 = arith.constant 0 : index
    %1 = vector.load %arg2[%c0_1, %c0_2] : memref<128x128xf32, #tpu.memory_space<vmem>>, vector<128x128xf32>
    %cst = arith.constant dense<0.000000e+00> : vector<8x128xf32>
    %2 = tpu.matmul %0, %1, %cst {dimension_numbers = #tpu.dot_dimension_numbers<[1], [0], [0], [1], [0, 0, 1, 1], [], []>} : vector<8x128xf32>, vector<128x128xf32>, vector<8x128xf32> -> vector<8x128xf32>
    %c0_3 = arith.constant 0 : index
    %c0_4 = arith.constant 0 : index
    %3 = vector.load %arg3[%c0_3, %c0_4] : memref<1x128xf32, #tpu.memory_space<vmem>>, vector<1x128xf32>
    %4 = vector.broadcast %3 : vector<1x128xf32> to vector<8x128xf32>
    %5 = arith.addf %2, %4 : vector<8x128xf32>
    %cst_5 = arith.constant 0.000000e+00 : f32
    %6 = vector.broadcast %cst_5 : f32 to vector<8x128xf32>
    %7 = arith.maximumf %5, %6 : vector<8x128xf32>
    %c0_6 = arith.constant 0 : index
    %c0_7 = arith.constant 0 : index
    %8 = vector.load %arg4[%c0_6, %c0_7] : memref<8x128xf32, #tpu.memory_space<vmem>>, vector<8x128xf32>
    tpu.vector_store %arg4[%c0_6, %c0_7], %7 {strides = array<i32>} : memref<8x128xf32, #tpu.memory_space<vmem>>, vector<8x128xf32>,
    return
  }
  func.func @transform_0(%arg0: i32) -> (i32, i32) {
    %c0_i32 = arith.constant 0 : i32
    %c0_i32_0 = arith.constant 0 : i32
    return %arg0, %c0_i32 : i32, i32
  }
  func.func @transform_1(%arg0: i32) -> (i32, i32) {
    %c0_i32 = arith.constant 0 : i32
    %c0_i32_0 = arith.constant 0 : i32
    %c0_i32_1 = arith.constant 0 : i32
    return %c0_i32, %c0_i32_0 : i32, i32
  }
  func.func @transform_2(%arg0: i32) -> (i32, i32) {
    %c0_i32 = arith.constant 0 : i32
    %c0_i32_0 = arith.constant 0 : i32
    %c0_i32_1 = arith.constant 0 : i32
    return %c0_i32, %c0_i32_0 : i32, i32
  }
  func.func @transform_3(%arg0: i32) -> (i32, i32) {
    %c0_i32 = arith.constant 0 : i32
    %c0_i32_0 = arith.constant 0 : i32
    return %arg0, %c0_i32 : i32, i32
  }
}

</mosaic_0001>

<llo_original>
// kernel: tms_forward.1
$region0: #{tms_forward.1}
  #allocation0 [shape = 'u32[]', space=smem, size = 0x4, offset = 0x4, fixed_abs, tag = 'smem constant byte address 0x4 - core index']
  #allocation1 [shape = 'u32[144,128]{1,0:T(1,128)}', space=vmem, size = 0x12000, scoped, tag = 'internal scratch']
  %s0 = inlined_call_operand.vmem [shape: f32[8,128], index: 0, kind: input, shape index: {}]
  %s1 = inlined_call_operand.vmem [shape: f32[128,128], index: 1, kind: input, shape index: {}]
  %s2 = inlined_call_operand.vmem [shape: f32[1,128], index: 2, kind: input, shape index: {}]
  %s3 = inlined_call_operand.vmem [shape: f32[8,128], index: 3, kind: output, shape index: {}]
  %s4 = sld [smem:[#allocation0]]
  $region22: #{tms_forward.1} parent=0
    _
  %s6 = ssub.s32 1, %s4
  %s7 = scalar_select 0, %s6, %s4
  // Predicated region
  $region2: #{tms_forward.1} parent=0 // pred_check
    _
  $region3: #{tms_forward.1} parent=0 // pred_check_branch
    %9 = sbr.rel (0) target = $region5
  $region4: #{tms_forward.1} parent=0 // pred_region
    _
  $region5: #{tms_forward.1} parent=0 // pred_fallthru
    _
  // Predicated region
  $region6: #{tms_forward.1} parent=0 // pred_check
    _
  $region7: #{tms_forward.1} parent=0 // pred_check_branch
    %11 = sbr.rel (0) target = $region9
  $region8: #{tms_forward.1} parent=0 // pred_region
    _
  $region9: #{tms_forward.1} parent=0 // pred_fallthru
    _
  // Predicated region
  $region10: #{tms_forward.1} parent=0 // pred_check
    _
  $region11: #{tms_forward.1} parent=0 // pred_check_branch
    %13 = sbr.rel (0) target = $region13
  $region12: #{tms_forward.1} parent=0 // pred_region
    _
  $region13: #{tms_forward.1} parent=0 // pred_fallthru
    _
  %v14 = vld [vmem:[%s0] sm:$0xff]
  %v15 = vld [vmem:[%s1] sm:$0xff]
  %v16 = vld [vmem:[%s1 + $0x8] sm:$0xff]
  %v17 = vld [vmem:[%s1 + $0x10] sm:$0xff]
  %v18 = vld [vmem:[%s1 + $0x18] sm:$0xff]
  %v19 = vld [vmem:[%s1 + $0x20] sm:$0xff]
  %v20 = vld [vmem:[%s1 + $0x28] sm:$0xff]
  %v21 = vld [vmem:[%s1 + $0x30] sm:$0xff]
  %v22 = vld [vmem:[%s1 + $0x38] sm:$0xff]
  %v23 = vld [vmem:[%s1 + $0x40] sm:$0xff]
  %v24 = vld [vmem:[%s1 + $0x48] sm:$0xff]
  %v25 = vld [vmem:[%s1 + $0x50] sm:$0xff]
  %v26 = vld [vmem:[%s1 + $0x58] sm:$0xff]
  %v27 = vld [vmem:[%s1 + $0x60] sm:$0xff]
  %v28 = vld [vmem:[%s1 + $0x68] sm:$0xff]
  %v29 = vld [vmem:[%s1 + $0x70] sm:$0xff]
  %v30 = vld [vmem:[%s1 + $0x78] sm:$0xff]
  %v31 = vld [vmem:[%s2] sm:$0x1]
  %v33 = vlaneseq
  %v34 = vshrl.u32 %v33, 7
  %v35 = vsub.s32 0, %v34
  %v36 = vrot.slane %v31, %v35
  %38 = vmatprep.subr.mxu0 0.0
  %39 = vmatpush1.msra.mxu0 %v15
  %40 = vmatprep.subr.mxu0 0.0
  %41 = vmatpush1.msra.mxu0 %v16
  %42 = vmatprep.subr.mxu0 0.0
  %43 = vmatpush1.msra.mxu0 %v17
  %44 = vmatprep.subr.mxu0 0.0
  %45 = vmatpush1.msra.mxu0 %v18
  %46 = vmatprep.subr.mxu0 0.0
  %47 = vmatpush1.msra.mxu0 %v19
  %48 = vmatprep.subr.mxu0 0.0
  %49 = vmatpush1.msra.mxu0 %v20
  %50 = vmatprep.subr.mxu0 0.0
  %51 = vmatpush1.msra.mxu0 %v21
  %52 = vmatprep.subr.mxu0 0.0
  %53 = vmatpush1.msra.mxu0 %v22
  %54 = vmatprep.subr.mxu0 0.0
  %55 = vmatpush1.msra.mxu0 %v23
  %56 = vmatprep.subr.mxu0 0.0
  %57 = vmatpush1.msra.mxu0 %v24
  %58 = vmatprep.subr.mxu0 0.0
  %59 = vmatpush1.msra.mxu0 %v25
  %60 = vmatprep.subr.mxu0 0.0
  %61 = vmatpush1.msra.mxu0 %v26
  %62 = vmatprep.subr.mxu0 0.0
  %63 = vmatpush1.msra.mxu0 %v27
  %64 = vmatprep.subr.mxu0 0.0
  %65 = vmatpush1.msra.mxu0 %v28
  %66 = vmatprep.subr.mxu0 0.0
  %67 = vmatpush1.msra.mxu0 %v29
  %68 = vmatprep.subr.mxu0 0.0
  %69 = vmatpush1.msra.mxu0 %v30
  %70 = vmatprep.subr.mxu0 0.0
  %71 = vmatpush1.msra.mxu0 0.0
  %72 = vmatprep.subr.mxu0 0.0
  %73 = vmatpush1.msra.mxu0 0.0
  %74 = vmatprep.subr.mxu0 0.0
  %75 = vmatpush1.msra.mxu0 0.0
  %76 = vmatprep.subr.mxu0 0.0
  %77 = vmatpush1.msra.mxu0 0.0
  %78 = vmatprep.subr.mxu0 0.0
  %79 = vmatpush1.msra.mxu0 0.0
  %80 = vmatprep.subr.mxu0 0.0
  %81 = vmatpush1.msra.mxu0 0.0
  %82 = vmatprep.subr.mxu0 0.0
  %83 = vmatpush1.msra.mxu0 0.0
  %84 = vmatprep.subr.mxu0 0.0
  %85 = vmatpush1.msra.mxu0 0.0
  %86 = vmatprep.subr.mxu0 0.0
  %87 = vmatpush1.msra.mxu0 0.0
  %88 = vmatprep.subr.mxu0 0.0
  %89 = vmatpush1.msra.mxu0 0.0
  %90 = vmatprep.subr.mxu0 0.0
  %91 = vmatpush1.msra.mxu0 0.0
  %92 = vmatprep.subr.mxu0 0.0
  %93 = vmatpush1.msra.mxu0 0.0
  %94 = vmatprep.subr.mxu0 0.0
  %95 = vmatpush1.msra.mxu0 0.0
  %96 = vmatprep.subr.mxu0 0.0
  %97 = vmatpush1.msra.mxu0 0.0
  %98 = vmatprep.subr.mxu0 0.0
  %99 = vmatpush1.msra.mxu0 0.0
  %100 = vmatprep.subr.mxu0 0.0
  %101 = vmatpush1.msra.mxu0 0.0
  %102 = vmatprep.mubr.f32.mxu0 0.0
  %103 = vmatmul.mubr.f32.gmra.mrb[0].mxu0 %v14
  %v104 = vpop.f32.mrb[0].mxu0
  %v105 = vadd.f32 %v36, %v104
  %v106 = vpop.f32.mrb[0].mxu0
  %107 = vdwg.mxu0
  %v108 = vmax.f32 %v105, 0.0
  %109 = vst [vmem:[%s3] sm:$0xff] %v108
  // Predicated region
  $region14: #{tms_forward.1} parent=0 // pred_check
    _
  $region15: #{tms_forward.1} parent=0 // pred_check_branch
    %111 = sbr.rel (0) target = $region17
  $region16: #{tms_forward.1} parent=0 // pred_region
    _
  $region17: #{tms_forward.1} parent=0 // pred_fallthru
    _
  // Predicated region
  $region18: #{tms_forward.1} parent=0 // pred_check
    _
  $region19: #{tms_forward.1} parent=0 // pred_check_branch
    %113 = sbr.rel (0) target = $region21
  $region20: #{tms_forward.1} parent=0 // pred_region
    _
  $region21: #{tms_forward.1} parent=0 // pred_fallthru
    _

</llo_original>
